<compile_context>
chip_gen: v7x
topology: tpu7x:2x2x1
jax: 0.10.0
libtpu: 0.0.40
codegen_flags: <defaults>
</compile_context>

<pallas_src>
import functools

import jax
import jax.numpy as jnp
from jax.experimental import pallas as pl
from jax.experimental.pallas import tpu as pltpu

_LANE = 128
# Sublane packing of the second-to-last dim per element size (f32 / bf16 / i8).
_SUBLANES = {4: 8, 2: 16, 1: 32}


def _plain_sum(x, fns):
    acc = fns[0](x)
    for fn in fns[1:]:
        acc = acc + fn(x)
    return acc


def _parallel_sum_kernel(x_ref, o_ref, *, fns, compute_dtype):
    """x_ref / o_ref: (tile, 128) VMEM tiles in the array's native dtype.

    Single load of the resident tile, all branches evaluated on the vreg-
    resident value, accumulated in vregs, one lane-dense store.  Partial last
    blocks rely on Pallas' masked stores, so values computed from padded rows
    never reach HBM.
    """
    x = x_ref[...].astype(compute_dtype)
    acc = fns[0](x)
    for fn in fns[1:]:
        acc = acc + fn(x)
    o_ref[...] = acc.astype(o_ref.dtype)


def parallel_forward(x, fns, *, tile_rows=4096, compute_dtype=jnp.float32,
                     fallback_elements=1 << 15):
    """Pallas equivalent of Parallel(*fns)(x) for elementwise JAX branch fns."""
    fns = tuple(fns)
    assert len(fns) >= 1

    # Contract: every branch must be elementwise / shape-preserving.
    probe = jax.ShapeDtypeStruct((8, _LANE), compute_dtype)
    for fn in fns:
        if jax.eval_shape(fn, probe).shape != probe.shape:
            raise ValueError(
                "Parallel branch fns must be elementwise (shape-preserving); "
                "reductions / reshapes / convolutions cannot be fused per-tile.")

    n = x.size
    itemsize = jnp.dtype(x.dtype).itemsize
    # Tiny tensors or unsupported dtypes: plain fused XLA beats kernel-launch
    # overhead and avoids a lossy f32 round trip for integer inputs.
    if (n < fallback_elements
            or not jnp.issubdtype(x.dtype, jnp.floating)
            or itemsize not in _SUBLANES):
        return _plain_sum(x, fns)

    sub = _SUBLANES[itemsize]
    chunk = _LANE * sub                       # smallest natively tiled slab
    n_main = (n // chunk) * chunk
    if n_main == 0:
        return _plain_sum(x, fns)

    xf = x.reshape(-1)                        # native dtype, no wrapper cast
    rows = n_main // _LANE
    x2d = xf[:n_main].reshape(rows, _LANE)    # lane-dense (rows, 128) view

    # Block as big as sensible (~2 MiB f32 at the default tile_rows=4096);
    # 2 operands x 2 buffers stays inside v5e's 16 MiB scoped VMEM and well
    # inside v7x's 32 MiB scoped / 64 MiB physical budget.
    tile = max(sub, (min(tile_rows, rows) // sub) * sub)
    # Keep >= 2 grid steps whenever possible so v7x's two TensorCores both get
    # work ("parallel" axis); no-op on single-TC v5e/v6e.
    if pl.cdiv(rows, tile) < 2 and rows >= 2 * sub:
        tile = (((rows + 1) // 2) + sub - 1) // sub * sub
    grid = (pl.cdiv(rows, tile),)

    out2d = pl.pallas_call(
        functools.partial(_parallel_sum_kernel, fns=fns,
                          compute_dtype=compute_dtype),
        out_shape=jax.ShapeDtypeStruct((rows, _LANE), x.dtype),  # native dtype
        grid=grid,
        in_specs=[pl.BlockSpec((tile, _LANE), lambda i: (i, 0))],
        out_specs=pl.BlockSpec((tile, _LANE), lambda i: (i, 0)),
        compiler_params=pltpu.CompilerParams(
            dimension_semantics=("parallel",)),
    )(x2d)

    out_flat = out2d.reshape(-1)
    if n_main != n:
        # Tiny unaligned tail (< LANE*sub elements): plain XLA; avoids padding
        # the whole array and slicing it back (two extra HBM passes).
        tail = _plain_sum(xf[n_main:].astype(compute_dtype), fns).astype(x.dtype)
        out_flat = jnp.concatenate([out_flat, tail])
    return out_flat.reshape(x.shape)


class Parallel:
    """Pallas port of minimagen.layers.Parallel: sum of parallel branches."""

    def __init__(self, *fns):
        self.fns = tuple(fns)

    def __call__(self, x, **kwargs):
        return parallel_forward(x, self.fns, **kwargs)


if __name__ == "__main__":
    key = jax.random.PRNGKey(0)
    # Small NCHW feature map, consistent with how Parallel is used in the Unet.
    x = jax.random.normal(key, (2, 4, 16, 16), dtype=jnp.float32)

    # Example parallel branches (elementwise, JAX-traceable, fused in-kernel).
    fns = (
        jax.nn.silu,                 # single EUP logistic per element
        lambda t: 0.5 * t + 0.25,
        jnp.tanh,
    )

    model = Parallel(*fns)

    # Force the kernel path for this small demo tensor (the default routes
    # tiny inputs through the faster plain-XLA fallback).
    out = jax.block_until_ready(parallel_forward(x, fns, fallback_elements=0))
    ref = jax.block_until_ready(sum(fn(x) for fn in fns))
    assert out.shape == x.shape and out.dtype == x.dtype
    assert jnp.allclose(out, ref, atol=1e-5, rtol=1e-5)

    # Unaligned bf16 input: native-dtype DMA, aligned prefix in-kernel, tail in XLA.
    xb = jax.random.normal(jax.random.PRNGKey(1), (3, 5, 17, 9), dtype=jnp.bfloat16)
    outb = jax.block_until_ready(parallel_forward(xb, fns, fallback_elements=0))
    refb = sum(fn(xb.astype(jnp.float32)) for fn in fns).astype(jnp.bfloat16)
    assert outb.shape == xb.shape and outb.dtype == xb.dtype
    assert jnp.allclose(outb.astype(jnp.float32), refb.astype(jnp.float32),
                        atol=2e-2, rtol=2e-2)

    # Default (performance) configuration on the spec-small input uses the
    # plain-XLA fallback; semantics must match.
    out_small = jax.block_until_ready(model(x))
    assert jnp.allclose(out_small, ref, atol=1e-5, rtol=1e-5)

    print("KERNEL_OK")
</pallas_src>

<mosaic_0001>
module attributes {stable_mosaic.version = 11 : i64} {
  func.func @_parallel_sum_kernel(%arg0: i32, %arg1: memref<8x128xf32, #tpu.memory_space<vmem>>, %arg2: memref<8x128xf32, #tpu.memory_space<vmem>>) attributes {dimension_semantics = [#tpu.dimension_semantics<parallel>], iteration_bounds = array<i64: 2>, scalar_prefetch = 0 : i64, scratch_operands = 0 : i64, tpu.core_type = #tpu.core_type<tc>, window_params = [{transform_indices = @transform_0, window_bounds = array<i64: 8, 128>}, {transform_indices = @transform_1, window_bounds = array<i64: 8, 128>}]} {
    %c0 = arith.constant 0 : index
    %c0_0 = arith.constant 0 : index
    %0 = vector.load %arg1[%c0, %c0_0] : memref<8x128xf32, #tpu.memory_space<vmem>>, vector<8x128xf32>
    %1 = arith.negf %0 : vector<8x128xf32>
    %2 = math.exp %1 : vector<8x128xf32>
    %cst = arith.constant 1.000000e+00 : f32
    %3 = vector.broadcast %cst : f32 to vector<8x128xf32>
    %4 = arith.addf %3, %2 : vector<8x128xf32>
    %5 = arith.divf %3, %4 : vector<8x128xf32>
    %6 = arith.mulf %0, %5 : vector<8x128xf32>
    %cst_1 = arith.constant 5.000000e-01 : f32
    %7 = vector.broadcast %cst_1 : f32 to vector<8x128xf32>
    %8 = arith.mulf %7, %0 : vector<8x128xf32>
    %cst_2 = arith.constant 2.500000e-01 : f32
    %9 = vector.broadcast %cst_2 : f32 to vector<8x128xf32>
    %10 = arith.addf %8, %9 : vector<8x128xf32>
    %11 = arith.addf %6, %10 : vector<8x128xf32>
    %12 = math.tanh %0 : vector<8x128xf32>
    %13 = arith.addf %11, %12 : vector<8x128xf32>
    %c0_3 = arith.constant 0 : index
    %c0_4 = arith.constant 0 : index
    %14 = vector.load %arg2[%c0_3, %c0_4] : memref<8x128xf32, #tpu.memory_space<vmem>>, vector<8x128xf32>
    tpu.vector_store %arg2[%c0_3, %c0_4], %13 {strides = array<i32>} : memref<8x128xf32, #tpu.memory_space<vmem>>, vector<8x128xf32>,
    return
  }
  func.func @transform_0(%arg0: i32) -> (i32, i32) {
    %c0_i32 = arith.constant 0 : i32
    %c0_i32_0 = arith.constant 0 : i32
    return %arg0, %c0_i32 : i32, i32
  }
  func.func @transform_1(%arg0: i32) -> (i32, i32) {
    %c0_i32 = arith.constant 0 : i32
    %c0_i32_0 = arith.constant 0 : i32
    return %arg0, %c0_i32 : i32, i32
  }
}

</mosaic_0001>

<llo_original>
// kernel: tpu_custom_call.1
$region0: #{tpu_custom_call.1}
  #allocation0 [shape = 'u32[]', space=smem, size = 0x4, offset = 0x4, fixed_abs, tag = 'smem constant byte address 0x4 - core index']
  #allocation1 [shape = 'u32[144,128]{1,0:T(1,128)}', space=vmem, size = 0x12000, scoped, tag = 'internal scratch']
  %s0 = inlined_call_operand.hbm [shape: f32[16,128], index: 0, kind: input, shape index: {}]
  %s1 = inlined_call_operand.hbm [shape: f32[16,128], index: 1, kind: output, shape index: {}]
  %s2 = sld [smem:[#allocation0]]
  $region41: #{tpu_custom_call.1} parent=0
    _
  %s4 = ssub.s32 1, %s2
  %s5 = scalar_select 0, %s4, %s2
  $region1: #{tpu_custom_call.1} parent=0
    #allocation2 [shape = 'u8[8192]{0}', space=vmem, size = 0x2000, scoped, tag = 'input window, operand 0']
    #allocation3 [shape = 's32[2]{0}', space=sflag, size = 0x8, scoped, tag = 'scoped memory for tpu_custom_call.1']
    #allocation4 [shape = 's32[2]{0}', space=sflag, size = 0x8, scoped, tag = 'scoped memory for tpu_custom_call.1']
    #allocation5 [shape = 'u8[8192]{0}', space=vmem, size = 0x2000, scoped, tag = 'output window, operand 0']
    %6 = vsyncpa [#allocation3], 0
    %s7 = scalar_lea.sflag [#allocation3], 1
    %8 = vsyncpa %s7, 0
    %9 = vsyncpa [#allocation4], 0
    %s10 = scalar_lea.sflag [#allocation4], 1
    %11 = vsyncpa %s10, 0
    loop: start=0, step=1, limit=4
    $region2: #{tpu_custom_call.1} parent=1 // loop_pre_header
      _
    $region3: #{tpu_custom_call.1} parent=1 // loop_header
      %s13 = sphi 0, %s17
      %p14 = scmp.ge.s32.totalorder %s13, 4
      %s23 = sphi 0, %s25
      %s26 = sphi 0, %s23
      %s27 = sphi 0, %s26
      %s43 = sphi 0, %s27
      %s49 = sphi 0, %s51
      %s52 = sphi 0, %s49
      %s53 = sphi 0, %s52
      %s69 = sphi 0, %s53
    $region4: #{tpu_custom_call.1} parent=1 // loop_header_branch
      %16 = sbr.rel (%p14) target = $region8
    $region5: #{tpu_custom_call.1} parent=1 // loop_body
      %s18 = ssub.s32 %s13, 1
      %s19 = ssub.s32 %s13, 2
      %s20 = sadd.s32 %s13, 1
      %s21 = ssub.s32 %s13, %s20
      %p22 = scmp.eq.s32.totalorder %s21, 0
      %s24 = sadd.s32 %s23, 1
      %s25 = scalar_select %p22, %s23, %s24
      %p28 = pneg %p22
      %p29 = scmp.eq.s32.totalorder %s13, 1
      %p30 = por %p28, %p29
      %p31 = scmp.ne.s32.totalorder %s23, %s26
      %p32 = scmp.eq.s32.totalorder %s13, 0
      %p33 = por %p31, %p32
      %p34 = scmp.ne.s32.totalorder %s23, %s26
      %p35 = scmp.eq.s32.totalorder %s18, 1
      %p36 = por %p34, %p35
      %p37 = scmp.ne.s32.totalorder %s26, %s27
      %p38 = scmp.eq.s32.totalorder %s18, 0
      %p39 = por %p37, %p38
      %p40 = scmp.ne.s32.totalorder %s26, %s27
      %p41 = scmp.eq.s32.totalorder %s19, 1
      %p42 = por %p40, %p41
      %p44 = scmp.ne.s32.totalorder %s27, %s43
      %p45 = scmp.eq.s32.totalorder %s19, 0
      %p46 = por %p44, %p45
      %s47 = ssub.s32 %s13, %s20
      %p48 = scmp.eq.s32.totalorder %s47, 0
      %s50 = sadd.s32 %s49, 1
      %s51 = scalar_select %p48, %s49, %s50
      %p54 = pneg %p48
      %p55 = scmp.eq.s32.totalorder %s13, 1
      %p56 = por %p54, %p55
      %p57 = scmp.ne.s32.totalorder %s49, %s52
      %p58 = scmp.eq.s32.totalorder %s13, 0
      %p59 = por %p57, %p58
      %p60 = scmp.ne.s32.totalorder %s49, %s52
      %p61 = scmp.eq.s32.totalorder %s18, 1
      %p62 = por %p60, %p61
      %p63 = scmp.ne.s32.totalorder %s52, %s53
      %p64 = scmp.eq.s32.totalorder %s18, 0
      %p65 = por %p63, %p64
      %p66 = scmp.ne.s32.totalorder %s52, %s53
      %p67 = scmp.eq.s32.totalorder %s19, 1
      %p68 = por %p66, %p67
      %p70 = scmp.ne.s32.totalorder %s53, %s69
      %p71 = scmp.eq.s32.totalorder %s19, 0
      %p72 = por %p70, %p71
      %p73 = scmp.le.s32.totalorder 1, %s13
      %p74 = scmp.lt.s32.totalorder %s13, 3
      %p75 = pnand %p73, %p74
      %p76 = pneg %p75
      // Predicated region
      $region9: #{tpu_custom_call.1} parent=5 // pred_check
        _
      $region10: #{tpu_custom_call.1} parent=5 // pred_check_branch
        %78 = sbr.rel (%p75) target = $region12
      $region11: #{tpu_custom_call.1} parent=5 // pred_region
        %s79 = ssub.s32 %s13, 1
      $region12: #{tpu_custom_call.1} parent=5 // pred_fallthru
        _
      %p80 = scmp.lt.s32.totalorder %s13, 2
      // Predicated region
      $region13: #{tpu_custom_call.1} parent=5 // pred_check
        %p81 = pneg %p80
      $region14: #{tpu_custom_call.1} parent=5 // pred_check_branch
        %83 = sbr.rel (%p81) target = $region16
      $region15: #{tpu_custom_call.1} parent=5 // pred_region
        // Predicated region
        $region17: #{tpu_custom_call.1} parent=15 // pred_check
          %p84 = pneg %p33
        $region18: #{tpu_custom_call.1} parent=15 // pred_check_branch
          %86 = sbr.rel (%p84) target = $region20
        $region19: #{tpu_custom_call.1} parent=15 // pred_region
          %s87 = sand.u32 %s23, 1
          %s88 = scalar_lea.sflag [#allocation3], %s87
          %s89 = sand.u32 %s23, 1
          %s90 = smul.addr %s89, 8
          %s91 = scalar_lea.vmem [#allocation2], %s90
          %s93 = ssub.s32 128, 128
          %94 = vsyncadd %s88, %s93
          %s95 = smul.addr %s13, 128
          %s96 = scalar_lea.hbm %s0, %s95
          %s98 = sshll.u32 %s91, 4
          %s99 = int_to_ptr.vmem [resolvable:$true] %s98
          %101 = dma.hbm_to_vmem [thread:$0]  %s96, 128, %s99, %s88
        $region20: #{tpu_custom_call.1} parent=15 // pred_fallthru
          _
      $region16: #{tpu_custom_call.1} parent=5 // pred_fallthru
        _
      %p102 = scmp.le.s32.totalorder 1, %s13
      %p103 = scmp.lt.s32.totalorder %s13, 3
      %p104 = pnand %p102, %p103
      %p105 = pneg %p104
      // Predicated region
      $region21: #{tpu_custom_call.1} parent=5 // pred_check
        _
      $region22: #{tpu_custom_call.1} parent=5 // pred_check_branch
        %107 = sbr.rel (%p104) target = $region24
      $region23: #{tpu_custom_call.1} parent=5 // pred_region
        %s108 = ssub.s32 %s13, 1
        %s109 = sand.u32 %s26, 1
        %s110 = scalar_lea.sflag [#allocation3], %s109
        %s111 = sand.u32 %s26, 1
        %s112 = smul.addr %s111, 8
        %s113 = scalar_lea.vmem [#allocation2], %s112
        // Predicated region
        $region25: #{tpu_custom_call.1} parent=23 // pred_check
          %p114 = pneg %p39
        $region26: #{tpu_custom_call.1} parent=23 // pred_check_branch
          %116 = sbr.rel (%p114) target = $region28
        $region27: #{tpu_custom_call.1} parent=23 // pred_region
          %117 = dma.done %s110, 128
        $region28: #{tpu_custom_call.1} parent=23 // pred_fallthru
          _
        %s118 = sand.u32 %s26, 1
        %s119 = scalar_lea.sflag [#allocation3], %s118
        %s120 = sand.u32 %s26, 1
        %s121 = smul.addr %s120, 8
        %s122 = scalar_lea.vmem [#allocation2], %s121
        %p123 = pneg %p39
        %p124 = pneg %p36
        %p125 = pneg %p65
        %p126 = pneg %p62
        %s127 = sand.u32 %s52, 1
        %s128 = scalar_lea.sflag [#allocation4], %s127
        %s129 = sand.u32 %s52, 1
        %s130 = smul.addr %s129, 8
        %s131 = scalar_lea.vmem [#allocation5], %s130
        %v132 = vld [vmem:[%s113] sm:$0xff]
        %v133 = vxor.u32 %v132, 2147483648
        %v134 = vmul.f32 %v133, 1.442695
        %v135 = vpow.pop %v134
        %v136 = vadd.f32 %v135, 1.0
        %v137 = vrcp.pop %v136
        %v138 = vmul.f32 1.0, %v137
        %v139 = vmul.f32 %v132, %v138
        %v140 = vmul.f32 %v132, 0.5
        %v141 = vadd.f32 %v140, 0.25
        %v142 = vadd.f32 %v139, %v141
        %v143 = vtanh.pop %v132
        %v144 = vadd.f32 %v142, %v143
        %145 = vst [vmem:[%s131] sm:$0xff] %v144
        %s146 = sand.u32 %s52, 1
        %s147 = scalar_lea.sflag [#allocation4], %s146
        %s148 = sand.u32 %s52, 1
        %s149 = smul.addr %s148, 8
        %s150 = scalar_lea.vmem [#allocation5], %s149
        // Predicated region
        $region29: #{tpu_custom_call.1} parent=23 // pred_check
          %p151 = pneg %p62
        $region30: #{tpu_custom_call.1} parent=23 // pred_check_branch
          %153 = sbr.rel (%p151) target = $region32
        $region31: #{tpu_custom_call.1} parent=23 // pred_region
          %s155 = ssub.s32 128, 128
          %156 = vsyncadd %s147, %s155
          %s157 = smul.addr %s18, 128
          %s158 = scalar_lea.hbm %s1, %s157
          %s160 = sshll.u32 %s150, 4
          %s161 = int_to_ptr.vmem [resolvable:$true] %s160
          %163 = dma.vmem_to_hbm [thread:$0]  %s161, 128, %s158, %s147
        $region32: #{tpu_custom_call.1} parent=23 // pred_fallthru
          _
      $region24: #{tpu_custom_call.1} parent=5 // pred_fallthru
        _
      %p164 = scmp.le.s32.totalorder 2, %s13
      // Predicated region
      $region33: #{tpu_custom_call.1} parent=5 // pred_check
        %p165 = pneg %p164
      $region34: #{tpu_custom_call.1} parent=5 // pred_check_branch
        %167 = sbr.rel (%p165) target = $region36
      $region35: #{tpu_custom_call.1} parent=5 // pred_region
        %s168 = ssub.s32 %s13, 2
        // Predicated region
        $region37: #{tpu_custom_call.1} parent=35 // pred_check
          %p169 = pneg %p68
        $region38: #{tpu_custom_call.1} parent=35 // pred_check_branch
          %171 = sbr.rel (%p169) target = $region40
        $region39: #{tpu_custom_call.1} parent=35 // pred_region
          %s172 = sand.u32 %s53, 1
          %s173 = scalar_lea.sflag [#allocation4], %s172
          %s174 = sand.u32 %s53, 1
          %s175 = smul.addr %s174, 8
          %s176 = scalar_lea.vmem [#allocation5], %s175
          %177 = dma.done %s173, 128
        $region40: #{tpu_custom_call.1} parent=35 // pred_fallthru
          _
      $region36: #{tpu_custom_call.1} parent=5 // pred_fallthru
        _
    $region6: #{tpu_custom_call.1} parent=1 // loop_footer
      %s17 = sadd.s32 1, %s13
    $region7: #{tpu_custom_call.1} parent=1 // loop_footer_branch
      %12 = sbr.rel target = $region3
    $region8: #{tpu_custom_call.1} parent=1 // loop_exit
      _
    %178 = vsyncpa [#allocation3], 1
    %s179 = scalar_lea.sflag [#allocation3], 1
    %180 = vsyncpa %s179, 1
    %181 = vsyncpa [#allocation4], 1
    %s182 = scalar_lea.sflag [#allocation4], 1
    %183 = vsyncpa %s182, 1

</llo_original>
